<compile_context>
chip_gen: v7x
topology: tpu7x:2x2x1
jax: 0.10.0
libtpu: 0.0.40
codegen_flags: <defaults>
</compile_context>

<pallas_src>
import jax
import jax.numpy as jnp
from jax.experimental import pallas as pl
from jax.experimental.pallas import tpu as pltpu


def _add_coords_kernel(coords_ref, x_ref, o_ref):
    # coords_ref : (n_hw, K, THW) resident  OR  (1, K, THW) streamed per s-tile
    # x_ref      : (BT, C, THW)   input channels for this (batch, spatial) tile
    # o_ref      : (BT, C+K, THW)
    BT, C, THW = x_ref.shape
    K = coords_ref.shape[1]

    if coords_ref.shape[0] == 1:
        coords = coords_ref[0]                       # streamed / single spatial tile
    else:
        coords = coords_ref[pl.program_id(0)]        # resident map: pick this tile

    # Single full-block store: pass-through channels + broadcast coord channels.
    o_ref[...] = jnp.concatenate(
        [x_ref[...], jnp.broadcast_to(coords[None, :, :], (BT, K, THW))],
        axis=1,
    )


def _largest_divisor_leq(n: int, cap: int) -> int:
    cap = max(1, min(n, cap))
    for d in range(cap, 0, -1):
        if n % d == 0:
            return d
    return 1


def _choose_spatial_tile(HW: int, bytes_per_spatial: int, target_bytes: int) -> int:
    """Lane tile: whole image if it fits the target, else a multiple of 128 near it."""
    if HW * bytes_per_spatial <= target_bytes:
        return HW                                    # single block (full-dim is legal)
    lanes = (target_bytes // max(bytes_per_spatial, 1)) // 128 * 128
    if lanes == 0:
        lanes = 128                                  # pathological channel count
    else:
        lanes = max(lanes, 512)                      # >=512 lanes ~ 85% of HBM roofline
    lanes = min(lanes, pl.cdiv(HW, 128) * 128)       # never exceed the padded image
    return lanes


def _num_tensorcores() -> int:
    """Best-effort TensorCores per device (2 on v7x, 1 on v5e/v6e); safe fallback 1."""
    try:
        info = pltpu.get_tpu_info()
    except Exception:
        return 1
    for name in ("num_cores", "core_count", "num_tensorcores",
                 "tensorcore_count", "cores_per_chip", "num_cores_per_chip"):
        v = getattr(info, name, None)
        if isinstance(v, int) and v > 0:
            return v
    return 1


def add_coords(x: jax.Array, with_r: bool = False, *,
               target_bytes: int = 4 << 20, num_cores: int | None = None) -> jax.Array:
    """Pallas equivalent of AddCoords.forward (NCHW)."""
    B, C, H, W = x.shape
    K = 3 if with_r else 2
    C_out = C + K
    HW = H * W
    dtype = x.dtype
    itemsize = jnp.dtype(dtype).itemsize

    # ---- constant coordinate maps (computed once; identical for every batch) ----
    ii = jnp.arange(H, dtype=jnp.float32)[:, None]                    # (H, 1)
    jj = jnp.arange(W, dtype=jnp.float32)[None, :]                    # (1, W)
    xx = jnp.broadcast_to(ii / jnp.float32(H - 1) * 2.0 - 1.0, (H, W)).astype(dtype)
    yy = jnp.broadcast_to(jj / jnp.float32(W - 1) * 2.0 - 1.0, (H, W)).astype(dtype)
    maps = [xx, yy]
    if with_r:
        # rr computed after the cast, matching torch's type_as-then-sqrt order.
        maps.append(jnp.sqrt((xx - 0.5) ** 2 + (yy - 0.5) ** 2).astype(dtype))
    coord_map = jnp.stack(maps, axis=0).reshape(K, HW)                # (K, H*W)

    # ---- lane-dense flattened layout & block sizing ----
    x3 = x.reshape(B, C, HW)

    bytes_per_spatial = (C + C_out) * itemsize
    THW = _choose_spatial_tile(HW, bytes_per_spatial, target_bytes)

    if THW >= HW:
        bt_cap = max(1, target_bytes // max(HW * bytes_per_spatial, 1))
        BT = _largest_divisor_leq(B, bt_cap)
    else:
        BT = 1

    n_hw = pl.cdiv(HW, THW)
    n_b = B // BT

    # Force >=2 grid steps only when a second TensorCore exists to feed (v7x).
    if num_cores is None:
        num_cores = _num_tensorcores()
    if num_cores >= 2 and n_hw * n_b < 2:
        if B >= 2:
            BT = _largest_divisor_leq(B, (B + 1) // 2)
            n_b = B // BT
        elif HW > 128:
            THW = max(128, pl.cdiv(pl.cdiv(HW, 2), 128) * 128)
            n_hw = pl.cdiv(HW, THW)

    # ---- coordinate-map packaging: (n_hw, K, THW), padded on the lane axis ----
    HW_pad = n_hw * THW
    if HW_pad != HW:
        coord_map = jnp.pad(coord_map, ((0, 0), (0, HW_pad - HW)))
    coord_full = coord_map.reshape(K, n_hw, THW).transpose(1, 0, 2)   # (n_hw, K, THW)

    coords_resident = K * HW_pad * itemsize <= (1 << 20)
    if coords_resident:
        coord_spec = pl.BlockSpec((n_hw, K, THW), lambda s, b: (0, 0, 0))
        coord_buf_bytes = n_hw * K * THW * itemsize
    else:
        coord_spec = pl.BlockSpec((1, K, THW), lambda s, b: (s, 0, 0))
        coord_buf_bytes = K * THW * itemsize

    # ---- explicit scoped-VMEM budget from the double-buffered working set ----
    in_block = BT * C * THW * itemsize
    out_block = BT * C_out * THW * itemsize
    working_set = 2 * (in_block + out_block + coord_buf_bytes)
    vmem_limit = int(min(48 << 20, max(16 << 20, 2 * working_set)))

    cost = pl.CostEstimate(
        flops=0, transcendentals=0,
        bytes_accessed=int(B * (C + C_out) * HW * itemsize + K * HW_pad * itemsize))

    out3 = pl.pallas_call(
        _add_coords_kernel,
        out_shape=jax.ShapeDtypeStruct((B, C_out, HW), dtype),
        grid_spec=pltpu.PrefetchScalarGridSpec(
            num_scalar_prefetch=0,
            grid=(n_hw, n_b),                        # batch innermost: coords reused
            in_specs=[
                coord_spec,
                pl.BlockSpec((BT, C, THW), lambda s, b: (b, 0, s)),
            ],
            out_specs=pl.BlockSpec((BT, C_out, THW), lambda s, b: (b, 0, s)),
        ),
        compiler_params=pltpu.CompilerParams(
            dimension_semantics=("parallel", "parallel"),
            vmem_limit_bytes=vmem_limit),
        cost_estimate=cost,
    )(coord_full, x3)

    return out3.reshape(B, C_out, H, W)


def _add_coords_ref(x: jax.Array, with_r: bool = False) -> jax.Array:
    """Pure-JAX reference mirroring the PyTorch code."""
    B, C, H, W = x.shape
    ii = jnp.arange(H, dtype=jnp.float32)[:, None]
    jj = jnp.arange(W, dtype=jnp.float32)[None, :]
    xx = jnp.broadcast_to(ii / jnp.float32(H - 1) * 2.0 - 1.0, (H, W))
    yy = jnp.broadcast_to(jj / jnp.float32(W - 1) * 2.0 - 1.0, (H, W))
    xx_b = jnp.broadcast_to(xx, (B, 1, H, W)).astype(x.dtype)
    yy_b = jnp.broadcast_to(yy, (B, 1, H, W)).astype(x.dtype)
    parts = [x, xx_b, yy_b]
    if with_r:
        rr = jnp.sqrt((xx_b - 0.5) ** 2 + (yy_b - 0.5) ** 2).astype(x.dtype)
        parts.append(rr)
    return jnp.concatenate(parts, axis=1)


if __name__ == "__main__":
    key = jax.random.PRNGKey(0)
    B, C, H, W = 2, 4, 16, 16
    x = jax.random.normal(key, (B, C, H, W), dtype=jnp.float32)

    # with_r=False (module default)
    out = jax.block_until_ready(add_coords(x, with_r=False))
    ref = _add_coords_ref(x, with_r=False)
    assert out.shape == (B, C + 2, H, W)
    assert jnp.allclose(out, ref, atol=1e-6, rtol=1e-6)

    # with_r=True
    out_r = jax.block_until_ready(add_coords(x, with_r=True))
    ref_r = _add_coords_ref(x, with_r=True)
    assert out_r.shape == (B, C + 3, H, W)
    assert jnp.allclose(out_r, ref_r, atol=1e-6, rtol=1e-6)

    print("KERNEL_OK")
</pallas_src>

<mosaic_0001>
module attributes {stable_mosaic.version = 11 : i64} {
  func.func @_add_coords_kernel(%arg0: i32, %arg1: i32, %arg2: memref<1x2x256xf32, #tpu.memory_space<vmem>>, %arg3: memref<2x4x256xf32, #tpu.memory_space<vmem>>, %arg4: memref<2x6x256xf32, #tpu.memory_space<vmem>>) attributes {dimension_semantics = [#tpu.dimension_semantics<parallel>, #tpu.dimension_semantics<parallel>], iteration_bounds = array<i64: 1, 1>, scalar_prefetch = 0 : i64, scratch_operands = 0 : i64, tpu.core_type = #tpu.core_type<tc>, window_params = [{pipeline_mode = #tpu.pipeline_mode<synchronous>, transform_indices = @transform_0, window_bounds = array<i64: 1, 2, 256>}, {transform_indices = @transform_1, window_bounds = array<i64: 2, 4, 256>}, {transform_indices = @transform_2, window_bounds = array<i64: 2, 6, 256>}]} {
    %c0 = arith.constant 0 : index
    %c0_0 = arith.constant 0 : index
    %c0_1 = arith.constant 0 : index
    %0 = vector.load %arg2[%c0, %c0_0, %c0_1] : memref<1x2x256xf32, #tpu.memory_space<vmem>>, vector<1x2x256xf32>
    %1 = vector.shape_cast %0 : vector<1x2x256xf32> to vector<2x256xf32>
    %c0_2 = arith.constant 0 : index
    %c0_3 = arith.constant 0 : index
    %c0_4 = arith.constant 0 : index
    %2 = vector.load %arg3[%c0_2, %c0_3, %c0_4] : memref<2x4x256xf32, #tpu.memory_space<vmem>>, vector<2x4x256xf32>
    %3 = vector.shape_cast %1 : vector<2x256xf32> to vector<1x2x256xf32>
    %4 = vector.shape_cast %3 : vector<1x2x256xf32> to vector<1x2x256xf32>
    %5 = vector.broadcast %4 : vector<1x2x256xf32> to vector<2x2x256xf32>
    %6 = tpu.concatenate %2, %5 in 1 : vector<2x4x256xf32>, vector<2x2x256xf32> -> vector<2x6x256xf32>
    %c0_5 = arith.constant 0 : index
    %c0_6 = arith.constant 0 : index
    %c0_7 = arith.constant 0 : index
    %7 = vector.load %arg4[%c0_5, %c0_6, %c0_7] : memref<2x6x256xf32, #tpu.memory_space<vmem>>, vector<2x6x256xf32>
    tpu.vector_store %arg4[%c0_5, %c0_6, %c0_7], %6 {strides = array<i32>} : memref<2x6x256xf32, #tpu.memory_space<vmem>>, vector<2x6x256xf32>,
    return
  }
  func.func @transform_0(%arg0: i32, %arg1: i32) -> (i32, i32, i32) {
    %c0_i32 = arith.constant 0 : i32
    %c0_i32_0 = arith.constant 0 : i32
    %c0_i32_1 = arith.constant 0 : i32
    %c0_i32_2 = arith.constant 0 : i32
    return %c0_i32, %c0_i32_0, %c0_i32_1 : i32, i32, i32
  }
  func.func @transform_1(%arg0: i32, %arg1: i32) -> (i32, i32, i32) {
    %c0_i32 = arith.constant 0 : i32
    %c0_i32_0 = arith.constant 0 : i32
    return %arg1, %c0_i32, %arg0 : i32, i32, i32
  }
  func.func @transform_2(%arg0: i32, %arg1: i32) -> (i32, i32, i32) {
    %c0_i32 = arith.constant 0 : i32
    %c0_i32_0 = arith.constant 0 : i32
    return %arg1, %c0_i32, %arg0 : i32, i32, i32
  }
}

</mosaic_0001>

<llo_original>
// kernel: tpu_custom_call.1
$region0: #{tpu_custom_call.1}
  #allocation0 [shape = 'u32[]', space=smem, size = 0x4, offset = 0x4, fixed_abs, tag = 'smem constant byte address 0x4 - core index']
  #allocation1 [shape = 'u32[144,128]{1,0:T(1,128)}', space=vmem, size = 0x12000, scoped, tag = 'internal scratch']
  %s0 = inlined_call_operand.hbm [shape: f32[1,2,256], index: 0, kind: input, shape index: {}]
  %s1 = inlined_call_operand.hbm [shape: f32[2,4,256], index: 1, kind: input, shape index: {}]
  %s2 = inlined_call_operand.vmem [shape: f32[2,6,256], index: 2, kind: output, shape index: {}]
  %s3 = sld [smem:[#allocation0]]
  $region26: #{tpu_custom_call.1} parent=0
    _
  %s5 = ssub.s32 1, %s3
  %s6 = scalar_select 0, %s5, %s3
  $region1: #{tpu_custom_call.1} parent=0
    #allocation2 [shape = 'u8[2048]{0}', space=vmem, size = 0x800, scoped, tag = 'input window, operand 0, single buffered']
    #allocation3 [shape = 's32[1]{0}', space=sflag, size = 0x4, scoped, tag = 'scoped memory for tpu_custom_call.1']
    #allocation4 [shape = 'u8[8192]{0}', space=vmem, size = 0x2000, scoped, tag = 'input window, operand 1, single buffered']
    #allocation5 [shape = 's32[1]{0}', space=sflag, size = 0x4, scoped, tag = 'scoped memory for tpu_custom_call.1']
    %7 = vsyncpa [#allocation3], 0
    %8 = vsyncpa [#allocation5], 0
    // Predicated region
    $region2: #{tpu_custom_call.1} parent=1 // pred_check
      _
    $region3: #{tpu_custom_call.1} parent=1 // pred_check_branch
      %10 = sbr.rel (0) target = $region5
    $region4: #{tpu_custom_call.1} parent=1 // pred_region
      %s12 = ssub.s32 64, 64
      %13 = vsyncadd [#allocation3], %s12
      %s15 = sshll.u32 [#allocation2], 4
      %s16 = int_to_ptr.vmem [resolvable:$true] %s15
      %18 = dma.hbm_to_vmem [thread:$0]  %s0, 64, %s16, [#allocation3]
    $region5: #{tpu_custom_call.1} parent=1 // pred_fallthru
      _
    // Predicated region
    $region6: #{tpu_custom_call.1} parent=1 // pred_check
      _
    $region7: #{tpu_custom_call.1} parent=1 // pred_check_branch
      %20 = sbr.rel (0) target = $region9
    $region8: #{tpu_custom_call.1} parent=1 // pred_region
      %s22 = ssub.s32 256, 256
      %23 = vsyncadd [#allocation5], %s22
      %s24 = sshll.u32 [#allocation4], 4
      %s25 = int_to_ptr.vmem [resolvable:$true] %s24
      %30 = dma.hbm_to_vmem [thread:$0]  %s1, 256, %s25, [#allocation5], 128, 128, 8
    $region9: #{tpu_custom_call.1} parent=1 // pred_fallthru
      _
    // Predicated region
    $region10: #{tpu_custom_call.1} parent=1 // pred_check
      _
    $region11: #{tpu_custom_call.1} parent=1 // pred_check_branch
      %32 = sbr.rel (0) target = $region13
    $region12: #{tpu_custom_call.1} parent=1 // pred_region
      %33 = dma.done [#allocation3], 64
    $region13: #{tpu_custom_call.1} parent=1 // pred_fallthru
      _
    // Predicated region
    $region14: #{tpu_custom_call.1} parent=1 // pred_check
      _
    $region15: #{tpu_custom_call.1} parent=1 // pred_check_branch
      %35 = sbr.rel (0) target = $region17
    $region16: #{tpu_custom_call.1} parent=1 // pred_region
      %36 = dma.done [#allocation5], 256
    $region17: #{tpu_custom_call.1} parent=1 // pred_fallthru
      _
    %v37 = vld [vmem:[#allocation2] sm:$0xf]
    %v38 = vld [vmem:[#allocation4] sm:$0xff]
    %v39 = vld [vmem:[#allocation4 + $0x8] sm:$0xff]
    %v42 = vcombine.high %v38, %v38
    %v43 = vcombine.high %v39, %v39
    %v48 = vunpack.c.l.s4 1983009808
    %v49 = vunpack.c.0.s8 %v48
    %v50 = vlaneseq
    %v51 = vshrl.u32 %v50, 7
    %v52 = vsub.s32 %v49, %v51
    %v53 = vrot.slane %v37, %v52
    %v54 = vcombine.low %v53, %v53
    %vm57 = vcmask 1043456
    %v58 = vsel %vm57, %v38, %v54
    %v59 = vsel %vm57, %v42, %v53
    %v60 = vsel %vm57, %v39, %v54
    %v61 = vsel %vm57, %v43, %v53
    %62 = vst [vmem:[%s2] sm:$0x3f] %v58
    %63 = vst [vmem:[%s2 + $0x8] sm:$0x3f] %v59
    %64 = vst [vmem:[%s2 + $0x10] sm:$0x3f] %v60
    %65 = vst [vmem:[%s2 + $0x18] sm:$0x3f] %v61
    // Predicated region
    $region18: #{tpu_custom_call.1} parent=1 // pred_check
      _
    $region19: #{tpu_custom_call.1} parent=1 // pred_check_branch
      %67 = sbr.rel (0) target = $region21
    $region20: #{tpu_custom_call.1} parent=1 // pred_region
      _
    $region21: #{tpu_custom_call.1} parent=1 // pred_fallthru
      _
    // Predicated region
    $region22: #{tpu_custom_call.1} parent=1 // pred_check
      _
    $region23: #{tpu_custom_call.1} parent=1 // pred_check_branch
      %69 = sbr.rel (0) target = $region25
    $region24: #{tpu_custom_call.1} parent=1 // pred_region
      _
    $region25: #{tpu_custom_call.1} parent=1 // pred_fallthru
      _
    %70 = vsyncpa [#allocation3], 1
    %71 = vsyncpa [#allocation5], 1

</llo_original>
